<compile_context>
chip_gen: v5e
topology: v5e:2x2
jax: 0.10.0
libtpu: 0.0.40
codegen_flags: <defaults>
</compile_context>

<pallas_src>
import jax
import jax.numpy as jnp
from jax.experimental import pallas as pl
from jax.experimental.pallas import tpu as pltpu

LANE = 128                              # TPU lane width: alignment for feature dims
NEG_INF = -1e30                         # fill for padded logit lanes of final layer
MAX_BATCH_TILE = 512                    # cap: keep f32 softmax epilogue out of spills
RESIDENT_PARAM_BUDGET = 24 * 1024 * 1024  # bytes; v7x-safe all-layers-resident budget


def _round_up(n, m):
    return ((n + m - 1) // m) * m


def _make_mlp_kernel(num_linear_layers):
    """Kernel computing the full (padded) MLP forward for one batch tile."""

    def kernel(*refs):
        # refs = (x_ref, w0, b0, w1, b1, ..., o_ref)
        x_ref = refs[0]
        o_ref = refs[-1]
        param_refs = refs[1:-1]

        h = x_ref[...]                           # bf16 (batch_tile, in_p)
        for li in range(num_linear_layers):
            w = param_refs[2 * li][...]          # bf16 (in_p, out_p)
            b = param_refs[2 * li + 1][...]      # f32  (1, out_p)
            acc = jnp.dot(h, w, preferred_element_type=jnp.float32) + b
            if li < num_linear_layers - 1:
                # ReLU, then back to bf16 for the next MXU pass.
                h = jnp.maximum(acc, 0.0).astype(jnp.bfloat16)
            else:
                h = acc                          # final logits stay f32

        # Numerically stable softmax over the (padded) feature axis.
        # Padded lanes carry -1e30 in the bias -> exp underflows to exactly 0.
        m = jnp.max(h, axis=1, keepdims=True)
        e = jnp.exp(h - m)
        denom = jnp.sum(e, axis=1, keepdims=True)
        inv = pl.reciprocal(denom, approx=True)  # EUP slot; frees the VALU
        o_ref[...] = (e * inv).astype(o_ref.dtype)

    return kernel


def _resident_spec(shape):
    """Full-block, grid-invariant, SINGLE-buffered spec for weights/biases.
    Rank is bound as a default arg (avoids late-binding closure bug)."""
    nd = len(shape)
    return pl.BlockSpec(shape, lambda i, _nd=nd: (0,) * _nd,
                        pipeline_mode=pl.Buffered(1))


def prepare_mlp_params(params):
    """One-time prepare step: pad every feature dim to a multiple of 128 lanes,
    cast weights to bf16, biases to f32; final-layer bias padded with -1e30 so
    padded logits softmax to exactly zero.  Do this ONCE, not per forward call."""
    num_layers = len(params)
    in_dim = params[0][0].shape[0]
    out_dim = params[-1][0].shape[1]

    dims = [_round_up(in_dim, LANE)]
    flat = []
    for li, (w, b) in enumerate(params):
        fi, fo = w.shape
        fi_p, fo_p = _round_up(fi, LANE), _round_up(fo, LANE)
        w_p = jnp.zeros((fi_p, fo_p), jnp.bfloat16).at[:fi, :fo].set(
            w.astype(jnp.bfloat16))
        bias_fill = 0.0 if li < num_layers - 1 else NEG_INF
        b_p = jnp.full((1, fo_p), bias_fill, jnp.float32).at[:, :fo].set(
            b.astype(jnp.float32))
        flat += [w_p, b_p]
        dims.append(fo_p)

    meta = dict(num_layers=num_layers, in_dim=in_dim, out_dim=out_dim,
                in_p=dims[0], out_p=dims[-1], dims=tuple(dims))
    return tuple(flat), meta


def mlp_forward(x, flat_params, meta, *, batch_tile=256):
    """MLP forward with a Pallas kernel, tiled over the batch.

    flat_params/meta come from prepare_mlp_params (pre-padded, pre-cast).
    Returns bfloat16 probabilities of shape (B, out_dim)."""
    B, in_dim = x.shape
    assert in_dim == meta["in_dim"]
    num_layers = meta["num_layers"]
    in_p, out_p, dims = meta["in_p"], meta["out_p"], meta["dims"]

    # VMEM guard: all layers resident simultaneously only works up to ~24 MiB of
    # (single-buffered) padded params on v7x's 64 MiB VMEM.
    resident_bytes = sum(int(p.size) * p.dtype.itemsize for p in flat_params)
    if resident_bytes > RESIDENT_PARAM_BUDGET:
        # TODO(synk): switch to a per-layer pipelined structure (layer/K grid axis
        # marked "arbitrary" or pltpu.emit_pipeline) when params exceed the budget.
        raise NotImplementedError("params too large for all-layers-resident kernel")

    # Batch tile: cap at 512 (epilogue vreg pressure). Weights are grid-invariant,
    # so extra grid steps cost only ~0.35 us each; keep the grid even so both v7x
    # TensorCores get work, single-TC chips (v5e/v6e) just loop serially.
    batch_tile = min(batch_tile, MAX_BATCH_TILE)
    Bp = _round_up(B, batch_tile)

    # Activation padded to 128 lanes (unmasked lane-dense loads).
    # TODO(synk): benchmark full-array-last-dim (in_dim=32) x load vs this 4x-padded
    # stream; only the padded variant gives unmasked vector loads.
    x_p = jnp.zeros((Bp, in_p), jnp.bfloat16).at[:B, :in_dim].set(
        x.astype(jnp.bfloat16))

    grid = (Bp // batch_tile,)
    in_specs = [pl.BlockSpec((batch_tile, in_p), lambda i: (i, 0))]
    in_specs += [_resident_spec(p.shape) for p in flat_params]
    # Lane-dense 128-wide output block (unmasked vst); bf16 halves writeback bytes.
    out_spec = pl.BlockSpec((batch_tile, out_p), lambda i: (i, 0))

    flops = 2 * Bp * sum(dims[i] * dims[i + 1] for i in range(num_layers))
    bytes_accessed = int(x_p.size * x_p.dtype.itemsize + resident_bytes
                         + Bp * out_p * 2)
    cost = pl.CostEstimate(flops=int(flops),
                           transcendentals=int(Bp * out_p),
                           bytes_accessed=bytes_accessed)

    out = pl.pallas_call(
        _make_mlp_kernel(num_layers),
        out_shape=jax.ShapeDtypeStruct((Bp, out_p), jnp.bfloat16),
        grid=grid,
        in_specs=in_specs,
        out_specs=out_spec,
        compiler_params=pltpu.CompilerParams(
            dimension_semantics=("parallel",),   # batch tiles shard across v7x TCs
            vmem_limit_bytes=32 * 1024 * 1024,   # explicit budget; fits v7x 64 MiB
        ),
        cost_estimate=cost,
    )(x_p, *flat_params)

    # Slice back to the logical output (padded lanes are exact zeros).
    return out[:B, :meta["out_dim"]]


def init_mlp_params(neurons, key):
    """Deterministic init mirroring torch.nn.Linear defaults:
       U(-1/sqrt(fan_in), 1/sqrt(fan_in)) for both weight and bias."""
    params = []
    for i in range(len(neurons) - 1):
        fan_in, fan_out = neurons[i], neurons[i + 1]
        key, kw, kb = jax.random.split(key, 3)
        bound = 1.0 / (fan_in ** 0.5)
        # Stored as (in, out) == transpose of PyTorch's (out, in).
        w = jax.random.uniform(kw, (fan_in, fan_out), jnp.float32, -bound, bound)
        b = jax.random.uniform(kb, (1, fan_out), jnp.float32, -bound, bound)
        params.append((w, b))
    return params


def mlp_reference(x, params):
    """Pure-JAX reference with the same bf16-operand / f32-accumulate numerics.
    NOTE: ~1e-3 tolerance vs a true f32 PyTorch baseline (bf16 MXU operands)."""
    h = x.astype(jnp.bfloat16)
    n = len(params)
    for li, (w, b) in enumerate(params):
        acc = jnp.dot(h, w.astype(jnp.bfloat16),
                      preferred_element_type=jnp.float32) + b
        if li < n - 1:
            h = jnp.maximum(acc, 0.0).astype(jnp.bfloat16)
        else:
            h = acc
    return jax.nn.softmax(h, axis=1)


if __name__ == "__main__":
    key = jax.random.PRNGKey(0)
    neurons = [32, 64, 48, 16]   # MLP(neurons): Linear/ReLU chain, final Linear+Softmax
    batch = 512
    batch_tile = 256             # grid of 2 "parallel" steps -> both v7x TCs get work

    key, kx = jax.random.split(key)
    x = jax.random.normal(kx, (batch, neurons[0]), jnp.float32)
    params = init_mlp_params(neurons, key)

    # One-time parameter preparation (padding + bf16 cast) OUTSIDE the forward.
    flat_params, meta = prepare_mlp_params(params)

    fwd = jax.jit(lambda xx, pp: mlp_forward(xx, pp, meta, batch_tile=batch_tile))
    out = jax.block_until_ready(fwd(x, flat_params))

    ref = mlp_reference(x, params)
    assert out.shape == (batch, neurons[-1])
    out_f32 = out.astype(jnp.float32)
    # bf16 output + approx reciprocal -> loose tolerances
    assert jnp.allclose(out_f32, ref, atol=4e-3, rtol=4e-3), "mismatch vs reference"
    assert jnp.allclose(jnp.sum(out_f32, axis=1), jnp.ones((batch,)), atol=5e-3)

    print("KERNEL_OK")
</pallas_src>

<mosaic_0001>
module attributes {stable_mosaic.version = 11 : i64} {
  func.func @kernel(%arg0: i32, %arg1: memref<256x128xbf16, #tpu.memory_space<vmem>>, %arg2: memref<128x128xbf16, #tpu.memory_space<vmem>>, %arg3: memref<1x128xf32, #tpu.memory_space<vmem>>, %arg4: memref<128x128xbf16, #tpu.memory_space<vmem>>, %arg5: memref<1x128xf32, #tpu.memory_space<vmem>>, %arg6: memref<128x128xbf16, #tpu.memory_space<vmem>>, %arg7: memref<1x128xf32, #tpu.memory_space<vmem>>, %arg8: memref<256x128xbf16, #tpu.memory_space<vmem>>) attributes {dimension_semantics = [#tpu.dimension_semantics<parallel>], iteration_bounds = array<i64: 2>, scalar_prefetch = 0 : i64, scratch_operands = 0 : i64, tpu.core_type = #tpu.core_type<tc>, window_params = [{transform_indices = @transform_0, window_bounds = array<i64: 256, 128>}, {pipeline_mode = #tpu.pipeline_mode<synchronous>, transform_indices = @transform_1, window_bounds = array<i64: 128, 128>}, {pipeline_mode = #tpu.pipeline_mode<synchronous>, transform_indices = @transform_2, window_bounds = array<i64: 1, 128>}, {pipeline_mode = #tpu.pipeline_mode<synchronous>, transform_indices = @transform_3, window_bounds = array<i64: 128, 128>}, {pipeline_mode = #tpu.pipeline_mode<synchronous>, transform_indices = @transform_4, window_bounds = array<i64: 1, 128>}, {pipeline_mode = #tpu.pipeline_mode<synchronous>, transform_indices = @transform_5, window_bounds = array<i64: 128, 128>}, {pipeline_mode = #tpu.pipeline_mode<synchronous>, transform_indices = @transform_6, window_bounds = array<i64: 1, 128>}, {transform_indices = @transform_7, window_bounds = array<i64: 256, 128>}]} {
    %c0 = arith.constant 0 : index
    %c0_0 = arith.constant 0 : index
    %0 = vector.load %arg1[%c0, %c0_0] : memref<256x128xbf16, #tpu.memory_space<vmem>>, vector<256x128xbf16>
    %c0_1 = arith.constant 0 : index
    %c0_2 = arith.constant 0 : index
    %1 = vector.load %arg2[%c0_1, %c0_2] : memref<128x128xbf16, #tpu.memory_space<vmem>>, vector<128x128xbf16>
    %c0_3 = arith.constant 0 : index
    %c0_4 = arith.constant 0 : index
    %2 = vector.load %arg3[%c0_3, %c0_4] : memref<1x128xf32, #tpu.memory_space<vmem>>, vector<1x128xf32>
    %cst = arith.constant dense<0.000000e+00> : vector<256x128xf32>
    %3 = tpu.matmul %0, %1, %cst {dimension_numbers = #tpu.dot_dimension_numbers<[1], [0], [0], [1], [0, 0, 1, 1], [], []>} : vector<256x128xbf16>, vector<128x128xbf16>, vector<256x128xf32> -> vector<256x128xf32>
    %4 = vector.broadcast %2 : vector<1x128xf32> to vector<256x128xf32>
    %5 = arith.addf %3, %4 : vector<256x128xf32>
    %cst_5 = arith.constant 0.000000e+00 : f32
    %6 = vector.broadcast %cst_5 : f32 to vector<256x128xf32>
    %7 = arith.maximumf %5, %6 : vector<256x128xf32>
    %8 = arith.truncf %7 : vector<256x128xf32> to vector<256x128xbf16>
    %c0_6 = arith.constant 0 : index
    %c0_7 = arith.constant 0 : index
    %9 = vector.load %arg4[%c0_6, %c0_7] : memref<128x128xbf16, #tpu.memory_space<vmem>>, vector<128x128xbf16>
    %c0_8 = arith.constant 0 : index
    %c0_9 = arith.constant 0 : index
    %10 = vector.load %arg5[%c0_8, %c0_9] : memref<1x128xf32, #tpu.memory_space<vmem>>, vector<1x128xf32>
    %cst_10 = arith.constant dense<0.000000e+00> : vector<256x128xf32>
    %11 = tpu.matmul %8, %9, %cst_10 {dimension_numbers = #tpu.dot_dimension_numbers<[1], [0], [0], [1], [0, 0, 1, 1], [], []>} : vector<256x128xbf16>, vector<128x128xbf16>, vector<256x128xf32> -> vector<256x128xf32>
    %12 = vector.broadcast %10 : vector<1x128xf32> to vector<256x128xf32>
    %13 = arith.addf %11, %12 : vector<256x128xf32>
    %cst_11 = arith.constant 0.000000e+00 : f32
    %14 = vector.broadcast %cst_11 : f32 to vector<256x128xf32>
    %15 = arith.maximumf %13, %14 : vector<256x128xf32>
    %16 = arith.truncf %15 : vector<256x128xf32> to vector<256x128xbf16>
    %c0_12 = arith.constant 0 : index
    %c0_13 = arith.constant 0 : index
    %17 = vector.load %arg6[%c0_12, %c0_13] : memref<128x128xbf16, #tpu.memory_space<vmem>>, vector<128x128xbf16>
    %c0_14 = arith.constant 0 : index
    %c0_15 = arith.constant 0 : index
    %18 = vector.load %arg7[%c0_14, %c0_15] : memref<1x128xf32, #tpu.memory_space<vmem>>, vector<1x128xf32>
    %cst_16 = arith.constant dense<0.000000e+00> : vector<256x128xf32>
    %19 = tpu.matmul %16, %17, %cst_16 {dimension_numbers = #tpu.dot_dimension_numbers<[1], [0], [0], [1], [0, 0, 1, 1], [], []>} : vector<256x128xbf16>, vector<128x128xbf16>, vector<256x128xf32> -> vector<256x128xf32>
    %20 = vector.broadcast %18 : vector<1x128xf32> to vector<256x128xf32>
    %21 = arith.addf %19, %20 : vector<256x128xf32>
    %cst_17 = arith.constant dense<0xFF800000> : vector<256xf32>
    %22 = vector.multi_reduction <maximumf>, %21, %cst_17 [1] : vector<256x128xf32> to vector<256xf32>
    %23 = vector.shape_cast %22 : vector<256xf32> to vector<256x1xf32>
    %24 = vector.broadcast %23 : vector<256x1xf32> to vector<256x128xf32>
    %25 = arith.subf %21, %24 : vector<256x128xf32>
    %26 = math.exp %25 : vector<256x128xf32>
    %cst_18 = arith.constant dense<0.000000e+00> : vector<256xf32>
    %27 = vector.multi_reduction <add>, %26, %cst_18 [1] : vector<256x128xf32> to vector<256xf32>
    %28 = vector.shape_cast %27 : vector<256xf32> to vector<256x1xf32>
    %29 = tpu.reciprocal %28 {approx = true} : vector<256x1xf32> -> vector<256x1xf32>
    %30 = vector.broadcast %29 : vector<256x1xf32> to vector<256x128xf32>
    %31 = arith.mulf %26, %30 : vector<256x128xf32>
    %32 = arith.truncf %31 : vector<256x128xf32> to vector<256x128xbf16>
    %c0_19 = arith.constant 0 : index
    %c0_20 = arith.constant 0 : index
    %33 = vector.load %arg8[%c0_19, %c0_20] : memref<256x128xbf16, #tpu.memory_space<vmem>>, vector<256x128xbf16>
    tpu.vector_store %arg8[%c0_19, %c0_20], %32 {strides = array<i32>} : memref<256x128xbf16, #tpu.memory_space<vmem>>, vector<256x128xbf16>,
    return
  }
  func.func @transform_0(%arg0: i32) -> (i32, i32) {
    %c0_i32 = arith.constant 0 : i32
    %c0_i32_0 = arith.constant 0 : i32
    return %arg0, %c0_i32 : i32, i32
  }
  func.func @transform_1(%arg0: i32) -> (i32, i32) {
    %c0_i32 = arith.constant 0 : i32
    %c0_i32_0 = arith.constant 0 : i32
    %c0_i32_1 = arith.constant 0 : i32
    return %c0_i32, %c0_i32_0 : i32, i32
  }
  func.func @transform_2(%arg0: i32) -> (i32, i32) {
    %c0_i32 = arith.constant 0 : i32
    %c0_i32_0 = arith.constant 0 : i32
    %c0_i32_1 = arith.constant 0 : i32
    return %c0_i32, %c0_i32_0 : i32, i32
  }
  func.func @transform_3(%arg0: i32) -> (i32, i32) {
    %c0_i32 = arith.constant 0 : i32
    %c0_i32_0 = arith.constant 0 : i32
    %c0_i32_1 = arith.constant 0 : i32
    return %c0_i32, %c0_i32_0 : i32, i32
  }
  func.func @transform_4(%arg0: i32) -> (i32, i32) {
    %c0_i32 = arith.constant 0 : i32
    %c0_i32_0 = arith.constant 0 : i32
    %c0_i32_1 = arith.constant 0 : i32
    return %c0_i32, %c0_i32_0 : i32, i32
  }
  func.func @transform_5(%arg0: i32) -> (i32, i32) {
    %c0_i32 = arith.constant 0 : i32
    %c0_i32_0 = arith.constant 0 : i32
    %c0_i32_1 = arith.constant 0 : i32
    return %c0_i32, %c0_i32_0 : i32, i32
  }
  func.func @transform_6(%arg0: i32) -> (i32, i32) {
    %c0_i32 = arith.constant 0 : i32
    %c0_i32_0 = arith.constant 0 : i32
    %c0_i32_1 = arith.constant 0 : i32
    return %c0_i32, %c0_i32_0 : i32, i32
  }
  func.func @transform_7(%arg0: i32) -> (i32, i32) {
    %c0_i32 = arith.constant 0 : i32
    %c0_i32_0 = arith.constant 0 : i32
    return %arg0, %c0_i32 : i32, i32
  }
}

</mosaic_0001>

<llo_original>
// kernel: _lambda_.1
$region0: #{_lambda_.1}
  #allocation0 [shape = 'u32[]', space=smem, size = 0x4, offset = 0x4, fixed_abs, tag = 'smem constant byte address 0x4 - core index']
  #allocation1 [shape = 'u32[72,128]{1,0:T(1,128)}', space=vmem, size = 0x9000, scoped, tag = 'internal scratch']
  %s0 = inlined_call_operand.vmem [shape: bf16[512,128], index: 0, kind: input, shape index: {}]
  %s1 = inlined_call_operand.vmem [shape: bf16[128,128], index: 1, kind: input, shape index: {}]
  %s2 = inlined_call_operand.vmem [shape: f32[1,128], index: 2, kind: input, shape index: {}]
  %s3 = inlined_call_operand.vmem [shape: bf16[128,128], index: 3, kind: input, shape index: {}]
  %s4 = inlined_call_operand.vmem [shape: f32[1,128], index: 4, kind: input, shape index: {}]
  %s5 = inlined_call_operand.vmem [shape: bf16[128,128], index: 5, kind: input, shape index: {}]
  %s6 = inlined_call_operand.vmem [shape: f32[1,128], index: 6, kind: input, shape index: {}]
  %s7 = inlined_call_operand.vmem [shape: bf16[512,128], index: 7, kind: output, shape index: {}]
  %s8 = sld [smem:[#allocation0]]
  $region61: #{_lambda_.1} parent=0
    _
  %s10 = ssub.s32 1, %s8
  %s11 = scalar_select 0, %s10, %s8
  loop: start=0, step=1, limit=4
  $region2: #{_lambda_.1} parent=0 // loop_pre_header
    _
  $region3: #{_lambda_.1} parent=0 // loop_header
    %s13 = sphi 0, %s17
    %p14 = scmp.ge.s32.totalorder %s13, 4
    %s23 = sphi 0, %s25
    %s26 = sphi 0, %s23
    %s27 = sphi 0, %s26
    %s43 = sphi 0, %s27
    %s47 = sphi 0, %s47
    %s49 = sphi 0, %s47
    %s50 = sphi 0, %s49
    %s64 = sphi 0, %s50
    %s68 = sphi 0, %s68
    %s70 = sphi 0, %s68
    %s71 = sphi 0, %s70
    %s85 = sphi 0, %s71
    %s89 = sphi 0, %s89
    %s91 = sphi 0, %s89
    %s92 = sphi 0, %s91
    %s106 = sphi 0, %s92
    %s110 = sphi 0, %s110
    %s112 = sphi 0, %s110
    %s113 = sphi 0, %s112
    %s127 = sphi 0, %s113
    %s131 = sphi 0, %s131
    %s133 = sphi 0, %s131
    %s134 = sphi 0, %s133
    %s148 = sphi 0, %s134
    %s152 = sphi 0, %s152
    %s154 = sphi 0, %s152
    %s155 = sphi 0, %s154
    %s169 = sphi 0, %s155
    %s175 = sphi 0, %s177
    %s178 = sphi 0, %s175
    %s179 = sphi 0, %s178
    %s195 = sphi 0, %s179
  $region4: #{_lambda_.1} parent=0 // loop_header_branch
    %16 = sbr.rel (%p14) target = $region8
  $region5: #{_lambda_.1} parent=0 // loop_body
    %s18 = ssub.s32 %s13, 1
    %s19 = ssub.s32 %s13, 2
    %s20 = sadd.s32 %s13, 1
    %s21 = ssub.s32 %s13, %s20
    %p22 = scmp.eq.s32.totalorder %s21, 0
    %s24 = sadd.s32 %s23, 1
    %s25 = scalar_select %p22, %s23, %s24
    %p28 = pneg %p22
    %p29 = scmp.eq.s32.totalorder %s13, 1
    %p30 = por %p28, %p29
    %p31 = scmp.ne.s32.totalorder %s23, %s26
    %p32 = scmp.eq.s32.totalorder %s13, 0
    %p33 = por %p31, %p32
    %p34 = scmp.ne.s32.totalorder %s23, %s26
    %p35 = scmp.eq.s32.totalorder %s18, 1
    %p36 = por %p34, %p35
    %p37 = scmp.ne.s32.totalorder %s26, %s27
    %p38 = scmp.eq.s32.totalorder %s18, 0
    %p39 = por %p37, %p38
    %p40 = scmp.ne.s32.totalorder %s26, %s27
    %p41 = scmp.eq.s32.totalorder %s19, 1
    %p42 = por %p40, %p41
    %p44 = scmp.ne.s32.totalorder %s27, %s43
    %p45 = scmp.eq.s32.totalorder %s19, 0
    %p46 = por %p44, %p45
    %s48 = sadd.s32 %s47, 1
    %p51 = scmp.eq.s32.totalorder %s13, 1
    %p52 = scmp.ne.s32.totalorder %s47, %s49
    %p53 = scmp.eq.s32.totalorder %s13, 0
    %p54 = por %p52, %p53
    %p55 = scmp.ne.s32.totalorder %s47, %s49
    %p56 = scmp.eq.s32.totalorder %s18, 1
    %p57 = por %p55, %p56
    %p58 = scmp.ne.s32.totalorder %s49, %s50
    %p59 = scmp.eq.s32.totalorder %s18, 0
    %p60 = por %p58, %p59
    %p61 = scmp.ne.s32.totalorder %s49, %s50
    %p62 = scmp.eq.s32.totalorder %s19, 1
    %p63 = por %p61, %p62
    %p65 = scmp.ne.s32.totalorder %s50, %s64
    %p66 = scmp.eq.s32.totalorder %s19, 0
    %p67 = por %p65, %p66
    %s69 = sadd.s32 %s68, 1
    %p72 = scmp.eq.s32.totalorder %s13, 1
    %p73 = scmp.ne.s32.totalorder %s68, %s70
    %p74 = scmp.eq.s32.totalorder %s13, 0
    %p75 = por %p73, %p74
    %p76 = scmp.ne.s32.totalorder %s68, %s70
    %p77 = scmp.eq.s32.totalorder %s18, 1
    %p78 = por %p76, %p77
    %p79 = scmp.ne.s32.totalorder %s70, %s71
    %p80 = scmp.eq.s32.totalorder %s18, 0
    %p81 = por %p79, %p80
    %p82 = scmp.ne.s32.totalorder %s70, %s71
    %p83 = scmp.eq.s32.totalorder %s19, 1
    %p84 = por %p82, %p83
    %p86 = scmp.ne.s32.totalorder %s71, %s85
    %p87 = scmp.eq.s32.totalorder %s19, 0
    %p88 = por %p86, %p87
    %s90 = sadd.s32 %s89, 1
    %p93 = scmp.eq.s32.totalorder %s13, 1
    %p94 = scmp.ne.s32.totalorder %s89, %s91
    %p95 = scmp.eq.s32.totalorder %s13, 0
    %p96 = por %p94, %p95
    %p97 = scmp.ne.s32.totalorder %s89, %s91
    %p98 = scmp.eq.s32.totalorder %s18, 1
    %p99 = por %p97, %p98
    %p100 = scmp.ne.s32.totalorder %s91, %s92
    %p101 = scmp.eq.s32.totalorder %s18, 0
    %p102 = por %p100, %p101
    %p103 = scmp.ne.s32.totalorder %s91, %s92
    %p104 = scmp.eq.s32.totalorder %s19, 1
    %p105 = por %p103, %p104
    %p107 = scmp.ne.s32.totalorder %s92, %s106
    %p108 = scmp.eq.s32.totalorder %s19, 0
    %p109 = por %p107, %p108
    %s111 = sadd.s32 %s110, 1
    %p114 = scmp.eq.s32.totalorder %s13, 1
    %p115 = scmp.ne.s32.totalorder %s110, %s112
    %p116 = scmp.eq.s32.totalorder %s13, 0
    %p117 = por %p115, %p116
    %p118 = scmp.ne.s32.totalorder %s110, %s112
    %p119 = scmp.eq.s32.totalorder %s18, 1
    %p120 = por %p118, %p119
    %p121 = scmp.ne.s32.totalorder %s112, %s113
    %p122 = scmp.eq.s32.totalorder %s18, 0
    %p123 = por %p121, %p122
    %p124 = scmp.ne.s32.totalorder %s112, %s113
    %p125 = scmp.eq.s32.totalorder %s19, 1
    %p126 = por %p124, %p125
    %p128 = scmp.ne.s32.totalorder %s113, %s127
    %p129 = scmp.eq.s32.totalorder %s19, 0
    %p130 = por %p128, %p129
    %s132 = sadd.s32 %s131, 1
    %p135 = scmp.eq.s32.totalorder %s13, 1
    %p136 = scmp.ne.s32.totalorder %s131, %s133
    %p137 = scmp.eq.s32.totalorder %s13, 0
    %p138 = por %p136, %p137
    %p139 = scmp.ne.s32.totalorder %s131, %s133
    %p140 = scmp.eq.s32.totalorder %s18, 1
    %p141 = por %p139, %p140
    %p142 = scmp.ne.s32.totalorder %s133, %s134
    %p143 = scmp.eq.s32.totalorder %s18, 0
    %p144 = por %p142, %p143
    %p145 = scmp.ne.s32.totalorder %s133, %s134
    %p146 = scmp.eq.s32.totalorder %s19, 1
    %p147 = por %p145, %p146
    %p149 = scmp.ne.s32.totalorder %s134, %s148
    %p150 = scmp.eq.s32.totalorder %s19, 0
    %p151 = por %p149, %p150
    %s153 = sadd.s32 %s152, 1
    %p156 = scmp.eq.s32.totalorder %s13, 1
    %p157 = scmp.ne.s32.totalorder %s152, %s154
    %p158 = scmp.eq.s32.totalorder %s13, 0
    %p159 = por %p157, %p158
    %p160 = scmp.ne.s32.totalorder %s152, %s154
    %p161 = scmp.eq.s32.totalorder %s18, 1
    %p162 = por %p160, %p161
    %p163 = scmp.ne.s32.totalorder %s154, %s155
    %p164 = scmp.eq.s32.totalorder %s18, 0
    %p165 = por %p163, %p164
    %p166 = scmp.ne.s32.totalorder %s154, %s155
    %p167 = scmp.eq.s32.totalorder %s19, 1
    %p168 = por %p166, %p167
    %p170 = scmp.ne.s32.totalorder %s155, %s169
    %p171 = scmp.eq.s32.totalorder %s19, 0
    %p172 = por %p170, %p171
    %s173 = ssub.s32 %s13, %s20
    %p174 = scmp.eq.s32.totalorder %s173, 0
    %s176 = sadd.s32 %s175, 1
    %s177 = scalar_select %p174, %s175, %s176
    %p180 = pneg %p174
    %p181 = scmp.eq.s32.totalorder %s13, 1
    %p182 = por %p180, %p181
    %p183 = scmp.ne.s32.totalorder %s175, %s178
    %p184 = scmp.eq.s32.totalorder %s13, 0
    %p185 = por %p183, %p184
    %p186 = scmp.ne.s32.totalorder %s175, %s178
    %p187 = scmp.eq.s32.totalorder %s18, 1
    %p188 = por %p186, %p187
    %p189 = scmp.ne.s32.totalorder %s178, %s179
    %p190 = scmp.eq.s32.totalorder %s18, 0
    %p191 = por %p189, %p190
    %p192 = scmp.ne.s32.totalorder %s178, %s179
    %p193 = scmp.eq.s32.totalorder %s19, 1
    %p194 = por %p192, %p193
    %p196 = scmp.ne.s32.totalorder %s179, %s195
    %p197 = scmp.eq.s32.totalorder %s19, 0
    %p198 = por %p196, %p197
    %p199 = scmp.le.s32.totalorder 1, %s13
    %p200 = scmp.lt.s32.totalorder %s13, 3
    %p201 = pnand %p199, %p200
    %p202 = pneg %p201
    // Predicated region
    $region9: #{_lambda_.1} parent=5 // pred_check
      _
    $region10: #{_lambda_.1} parent=5 // pred_check_branch
      %204 = sbr.rel (%p201) target = $region12
    $region11: #{_lambda_.1} parent=5 // pred_region
      %s205 = ssub.s32 %s13, 1
      // Predicated region
      $region13: #{_lambda_.1} parent=11 // pred_check
        %p206 = pneg %p60
      $region14: #{_lambda_.1} parent=11 // pred_check_branch
        %208 = sbr.rel (%p206) target = $region16
      $region15: #{_lambda_.1} parent=11 // pred_region
        _
      $region16: #{_lambda_.1} parent=11 // pred_fallthru
        _
      // Predicated region
      $region17: #{_lambda_.1} parent=11 // pred_check
        %p209 = pneg %p81
      $region18: #{_lambda_.1} parent=11 // pred_check_branch
        %211 = sbr.rel (%p209) target = $region20
      $region19: #{_lambda_.1} parent=11 // pred_region
        _
      $region20: #{_lambda_.1} parent=11 // pred_fallthru
        _
      // Predicated region
      $region21: #{_lambda_.1} parent=11 // pred_check
        %p212 = pneg %p102
      $region22: #{_lambda_.1} parent=11 // pred_check_branch
        %214 = sbr.rel (%p212) target = $region24
      $region23: #{_lambda_.1} parent=11 // pred_region
        _
      $region24: #{_lambda_.1} parent=11 // pred_fallthru
        _
      // Predicated region
      $region25: #{_lambda_.1} parent=11 // pred_check
        %p215 = pneg %p123
      $region26: #{_lambda_.1} parent=11 // pred_check_branch
        %217 = sbr.rel (%p215) target = $region28
      $region27: #{_lambda_.1} parent=11 // pred_region
        _
      $region28: #{_lambda_.1} parent=11 // pred_fallthru
        _
      // Predicated region
      $region29: #{_lambda_.1} parent=11 // pred_check
        %p218 = pneg %p144
      $region30: #{_lambda_.1} parent=11 // pred_check_branch
        %220 = sbr.rel (%p218) target = $region32
      $region31: #{_lambda_.1} parent=11 // pred_region
        _
      $region32: #{_lambda_.1} parent=11 // pred_fallthru
        _
      // Predicated region
      $region33: #{_lambda_.1} parent=11 // pred_check
        %p221 = pneg %p165
      $region34: #{_lambda_.1} parent=11 // pred_check_branch
        %223 = sbr.rel (%p221) target = $region36
      $region35: #{_lambda_.1} parent=11 // pred_region
        _
      $region36: #{_lambda_.1} parent=11 // pred_fallthru
        _
    $region12: #{_lambda_.1} parent=5 // pred_fallthru
      _
    %p224 = scmp.lt.s32.totalorder %s13, 2
    // Predicated region
    $region37: #{_lambda_.1} parent=5 // pred_check
      %p225 = pneg %p224
    $region38: #{_lambda_.1} parent=5 // pred_check_branch
      %227 = sbr.rel (%p225) target = $region40
    $region39: #{_lambda_.1} parent=5 // pred_region
      // Predicated region
      $region41: #{_lambda_.1} parent=39 // pred_check
        %p228 = pneg %p33
      $region42: #{_lambda_.1} parent=39 // pred_check_branch
        %230 = sbr.rel (%p228) target = $region44
      $region43: #{_lambda_.1} parent=39 // pred_region
        %s231 = smul.u32 32, %s13
        %p232 = scmp.lt.s32.totalorder %s231, 63
        %s233 = scalar_select %p232, %s231, 63
        %s234 = smul.addr %s233, 4
        %s235 = scalar_lea.vmem %s0, %s234
        %s236 = smul.u32 32, %s13
      $region44: #{_lambda_.1} parent=39 // pred_fallthru
        _
    $region40: #{_lambda_.1} parent=5 // pred_fallthru
      _
    %p237 = scmp.le.s32.totalorder 1, %s13
    %p238 = scmp.lt.s32.totalorder %s13, 3
    %p239 = pnand %p237, %p238
    %p240 = pneg %p239
    // Predicated region
    $region45: #{_lambda_.1} parent=5 // pred_check
      _
    $region46: #{_lambda_.1} parent=5 // pred_check_branch
      %242 = sbr.rel (%p239) target = $region48
    $region47: #{_lambda_.1} parent=5 // pred_region
      %s243 = ssub.s32 %s13, 1
      %s244 = smul.u32 32, %s18
      %p245 = scmp.lt.s32.totalorder %s244, 63
      %s246 = scalar_select %p245, %s244, 63
      %s247 = smul.addr %s246, 4
      %s248 = scalar_lea.vmem %s0, %s247
      %p249 = pneg %p39
      %p250 = pneg %p36
      %p251 = pneg %p60
      %p252 = pneg %p57
      %p253 = pneg %p81
      %p254 = pneg %p78
      %p255 = pneg %p102
      %p256 = pneg %p99
      %p257 = pneg %p123
      %p258 = pneg %p120
      %p259 = pneg %p144
      %p260 = pneg %p141
      %p261 = pneg %p165
      %p262 = pneg %p162
      %p263 = pneg %p191
      %p264 = pneg %p188
      %s265 = smul.u32 32, %s18
      %p266 = scmp.lt.s32.totalorder %s265, 63
      %s267 = scalar_select %p266, %s265, 63
      %s268 = smul.addr %s267, 4
      %s269 = scalar_lea.vmem %s7, %s268
      %s270 = smul.u32 32, %s18
      %p271 = scmp.lt.s32.totalorder %s270, 63
      %s272 = scalar_select %p271, %s270, 63
      %s273 = smul.addr %s272, 4
      %s274 = scalar_lea.vmem %s0, %s273
      %s275 = smul.u32 32, %s18
      %s276 = smul.u32 32, %s18
      %p277 = scmp.lt.s32.totalorder %s276, 63
      %s278 = scalar_select %p277, %s276, 63
      %s279 = smul.addr %s278, 4
      %s280 = scalar_lea.vmem %s7, %s279
      %s281 = smul.u32 32, %s18
      %v282 = vld [vmem:[%s274] sm:$0xf]
      %v283 = vld [vmem:[%s274 + $0x4] sm:$0xf]
      %v284 = vld [vmem:[%s274 + $0x8] sm:$0xf]
      %v285 = vld [vmem:[%s274 + $0xc] sm:$0xf]
      %v286 = vld [vmem:[%s274 + $0x10] sm:$0xf]
      %v287 = vld [vmem:[%s274 + $0x14] sm:$0xf]
      %v288 = vld [vmem:[%s274 + $0x18] sm:$0xf]
      %v289 = vld [vmem:[%s274 + $0x1c] sm:$0xf]
      %v290 = vld [vmem:[%s274 + $0x20] sm:$0xf]
      %v291 = vld [vmem:[%s274 + $0x24] sm:$0xf]
      %v292 = vld [vmem:[%s274 + $0x28] sm:$0xf]
      %v293 = vld [vmem:[%s274 + $0x2c] sm:$0xf]
      %v294 = vld [vmem:[%s274 + $0x30] sm:$0xf]
      %v295 = vld [vmem:[%s274 + $0x34] sm:$0xf]
      %v296 = vld [vmem:[%s274 + $0x38] sm:$0xf]
      %v297 = vld [vmem:[%s274 + $0x3c] sm:$0xf]
      %v298 = vld [vmem:[%s274 + $0x40] sm:$0xf]
      %v299 = vld [vmem:[%s274 + $0x44] sm:$0xf]
      %v300 = vld [vmem:[%s274 + $0x48] sm:$0xf]
      %v301 = vld [vmem:[%s274 + $0x4c] sm:$0xf]
      %v302 = vld [vmem:[%s274 + $0x50] sm:$0xf]
      %v303 = vld [vmem:[%s274 + $0x54] sm:$0xf]
      %v304 = vld [vmem:[%s274 + $0x58] sm:$0xf]
      %v305 = vld [vmem:[%s274 + $0x5c] sm:$0xf]
      %v306 = vld [vmem:[%s274 + $0x60] sm:$0xf]
      %v307 = vld [vmem:[%s274 + $0x64] sm:$0xf]
      %v308 = vld [vmem:[%s274 + $0x68] sm:$0xf]
      %v309 = vld [vmem:[%s274 + $0x6c] sm:$0xf]
      %v310 = vld [vmem:[%s274 + $0x70] sm:$0xf]
      %v311 = vld [vmem:[%s274 + $0x74] sm:$0xf]
      %v312 = vld [vmem:[%s274 + $0x78] sm:$0xf]
      %v313 = vld [vmem:[%s274 + $0x7c] sm:$0xf]
      %v314 = vld [vmem:[%s1] sm:$0xf]
      %v315 = vld [vmem:[%s1 + $0x4] sm:$0xf]
      %v316 = vld [vmem:[%s1 + $0x8] sm:$0xf]
      %v317 = vld [vmem:[%s1 + $0xc] sm:$0xf]
      %v318 = vld [vmem:[%s1 + $0x10] sm:$0xf]
      %v319 = vld [vmem:[%s1 + $0x14] sm:$0xf]
      %v320 = vld [vmem:[%s1 + $0x18] sm:$0xf]
      %v321 = vld [vmem:[%s1 + $0x1c] sm:$0xf]
      %v322 = vld [vmem:[%s1 + $0x20] sm:$0xf]
      %v323 = vld [vmem:[%s1 + $0x24] sm:$0xf]
      %v324 = vld [vmem:[%s1 + $0x28] sm:$0xf]
      %v325 = vld [vmem:[%s1 + $0x2c] sm:$0xf]
      %v326 = vld [vmem:[%s1 + $0x30] sm:$0xf]
      %v327 = vld [vmem:[%s1 + $0x34] sm:$0xf]
      %v328 = vld [vmem:[%s1 + $0x38] sm:$0xf]
      %v329 = vld [vmem:[%s1 + $0x3c] sm:$0xf]
      %v330 = vld [vmem:[%s2] sm:$0x1]
      %v332 = vperm.slane %v330, 0
      %v366 = vunpack.c.l.b16 %v282
      %v367 = vunpack.c.l.b16 %v283
      %v368 = vunpack.c.l.b16 %v284
      %v369 = vunpack.c.l.b16 %v285
      %v370 = vunpack.c.l.b16 %v286
      %v371 = vunpack.c.l.b16 %v287
      %v372 = vunpack.c.l.b16 %v288
      %v373 = vunpack.c.l.b16 %v289
      %v374 = vunpack.c.l.b16 %v290
      %v375 = vunpack.c.l.b16 %v291
      %v376 = vunpack.c.l.b16 %v292
      %v377 = vunpack.c.l.b16 %v293
      %v378 = vunpack.c.l.b16 %v294
      %v379 = vunpack.c.l.b16 %v295
      %v380 = vunpack.c.l.b16 %v296
      %v381 = vunpack.c.l.b16 %v297
      %v382 = vunpack.c.l.b16 %v298
      %v383 = vunpack.c.l.b16 %v299
      %v384 = vunpack.c.l.b16 %v300
      %v385 = vunpack.c.l.b16 %v301
      %v386 = vunpack.c.l.b16 %v302
      %v387 = vunpack.c.l.b16 %v303
      %v388 = vunpack.c.l.b16 %v304
      %v389 = vunpack.c.l.b16 %v305
      %v390 = vunpack.c.l.b16 %v306
      %v391 = vunpack.c.l.b16 %v307
      %v392 = vunpack.c.l.b16 %v308
      %v393 = vunpack.c.l.b16 %v309
      %v394 = vunpack.c.l.b16 %v310
      %v395 = vunpack.c.l.b16 %v311
      %v396 = vunpack.c.l.b16 %v312
      %v397 = vunpack.c.l.b16 %v313
      %v398 = vpack.c.b16 %v367, %v366
      %v399 = vpack.c.b16 %v369, %v368
      %v400 = vpack.c.b16 %v371, %v370
      %v401 = vpack.c.b16 %v373, %v372
      %v402 = vpack.c.b16 %v375, %v374
      %v403 = vpack.c.b16 %v377, %v376
      %v404 = vpack.c.b16 %v379, %v378
      %v405 = vpack.c.b16 %v381, %v380
      %v406 = vpack.c.b16 %v383, %v382
      %v407 = vpack.c.b16 %v385, %v384
      %v408 = vpack.c.b16 %v387, %v386
      %v409 = vpack.c.b16 %v389, %v388
      %v410 = vpack.c.b16 %v391, %v390
      %v411 = vpack.c.b16 %v393, %v392
      %v412 = vpack.c.b16 %v395, %v394
      %v413 = vpack.c.b16 %v397, %v396
      %v446 = vunpack.c.l.b16 %v314
      %v447 = vunpack.c.l.b16 %v315
      %v448 = vunpack.c.l.b16 %v316
      %v449 = vunpack.c.l.b16 %v317
      %v450 = vunpack.c.l.b16 %v318
      %v451 = vunpack.c.l.b16 %v319
      %v452 = vunpack.c.l.b16 %v320
      %v453 = vunpack.c.l.b16 %v321
      %v454 = vunpack.c.l.b16 %v322
      %v455 = vunpack.c.l.b16 %v323
      %v456 = vunpack.c.l.b16 %v324
      %v457 = vunpack.c.l.b16 %v325
      %v458 = vunpack.c.l.b16 %v326
      %v459 = vunpack.c.l.b16 %v327
      %v460 = vunpack.c.l.b16 %v328
      %v461 = vunpack.c.l.b16 %v329
      %v462 = vpack.c.b16 %v447, %v446
      %v463 = vpack.c.b16 %v449, %v448
      %v464 = vpack.c.b16 %v451, %v450
      %v465 = vpack.c.b16 %v453, %v452
      %v466 = vpack.c.b16 %v455, %v454
      %v467 = vpack.c.b16 %v457, %v456
      %v468 = vpack.c.b16 %v459, %v458
      %v469 = vpack.c.b16 %v461, %v460
      %478 = vmatpush.bf16.msra.mxu0 %v469
      %479 = vmatpush.bf16.msra.mxu0 %v468
      %480 = vmatpush.bf16.msra.mxu0 %v467
      %481 = vmatpush.bf16.msra.mxu0 %v466
      %482 = vmatpush.bf16.msra.mxu0 %v465
      %483 = vmatpush.bf16.msra.mxu0 %v464
      %484 = vmatpush.bf16.msra.mxu0 %v463
      %485 = vmatpush.bf16.msra.mxu0 %v462
      %486 = vmatmul.bf16.gmra.mxu0 %v398
      %v487 = vpop.f32.mrf.mxu0
      %v488 = vadd.f32 %v332, %v487
      %v489 = vpop.f32.mrf.mxu0
      %v490 = vadd.f32 %v332, %v489
      %491 = vmatmul.bf16.gmra.mxu0 %v399
      %v492 = vpop.f32.mrf.mxu0
      %v493 = vadd.f32 %v332, %v492
      %v494 = vpop.f32.mrf.mxu0
      %v495 = vadd.f32 %v332, %v494
      %496 = vmatmul.bf16.gmra.mxu0 %v400
      %v497 = vpop.f32.mrf.mxu0
      %v498 = vadd.f32 %v332, %v497
      %v499 = vpop.f32.mrf.mxu0
      %v500 = vadd.f32 %v332, %v499
      %501 = vmatmul.bf16.gmra.mxu0 %v401
      %v502 = vpop.f32.mrf.mxu0
      %v503 = vadd.f32 %v332, %v502
      %v504 = vpop.f32.mrf.mxu0
      %v505 = vadd.f32 %v332, %v504
      %506 = vmatmul.bf16.gmra.mxu0 %v402
      %v507 = vpop.f32.mrf.mxu0
      %v508 = vadd.f32 %v332, %v507
      %v509 = vpop.f32.mrf.mxu0
      %v510 = vadd.f32 %v332, %v509
      %511 = vmatmul.bf16.gmra.mxu0 %v403
      %v512 = vpop.f32.mrf.mxu0
      %v513 = vadd.f32 %v332, %v512
      %v514 = vpop.f32.mrf.mxu0
      %v515 = vadd.f32 %v332, %v514
      %516 = vmatmul.bf16.gmra.mxu0 %v404
      %v517 = vpop.f32.mrf.mxu0
      %v518 = vadd.f32 %v332, %v517
      %v519 = vpop.f32.mrf.mxu0
      %v520 = vadd.f32 %v332, %v519
      %521 = vmatmul.bf16.gmra.mxu0 %v405
      %v522 = vpop.f32.mrf.mxu0
      %v523 = vadd.f32 %v332, %v522
      %v524 = vpop.f32.mrf.mxu0
      %v525 = vadd.f32 %v332, %v524
      %526 = vmatmul.bf16.gmra.mxu0 %v406
      %v527 = vpop.f32.mrf.mxu0
      %v528 = vadd.f32 %v332, %v527
      %v529 = vpop.f32.mrf.mxu0
      %v530 = vadd.f32 %v332, %v529
      %531 = vmatmul.bf16.gmra.mxu0 %v407
      %v532 = vpop.f32.mrf.mxu0
      %v533 = vadd.f32 %v332, %v532
      %v534 = vpop.f32.mrf.mxu0
      %v535 = vadd.f32 %v332, %v534
      %536 = vmatmul.bf16.gmra.mxu0 %v408
      %v537 = vpop.f32.mrf.mxu0
      %v538 = vadd.f32 %v332, %v537
      %v539 = vpop.f32.mrf.mxu0
      %v540 = vadd.f32 %v332, %v539
      %541 = vmatmul.bf16.gmra.mxu0 %v409
      %v542 = vpop.f32.mrf.mxu0
      %v543 = vadd.f32 %v332, %v542
      %v544 = vpop.f32.mrf.mxu0
      %v545 = vadd.f32 %v332, %v544
      %546 = vmatmul.bf16.gmra.mxu0 %v410
      %v547 = vpop.f32.mrf.mxu0
      %v548 = vadd.f32 %v332, %v547
      %v549 = vpop.f32.mrf.mxu0
      %v550 = vadd.f32 %v332, %v549
      %551 = vmatmul.bf16.gmra.mxu0 %v411
      %v552 = vpop.f32.mrf.mxu0
      %v553 = vadd.f32 %v332, %v552
      %v554 = vpop.f32.mrf.mxu0
      %v555 = vadd.f32 %v332, %v554
      %556 = vmatmul.bf16.gmra.mxu0 %v412
      %v557 = vpop.f32.mrf.mxu0
      %v558 = vadd.f32 %v332, %v557
      %v559 = vpop.f32.mrf.mxu0
      %v560 = vadd.f32 %v332, %v559
      %561 = vmatmul.bf16.gmra.mxu0 %v413
      %v562 = vpop.f32.mrf.mxu0
      %v563 = vadd.f32 %v332, %v562
      %v564 = vpop.f32.mrf.mxu0
      %v565 = vadd.f32 %v332, %v564
      %566 = vdwg.mxu0
      %v567 = vmax.f32 %v488, 0.0
      %v568 = vmax.f32 %v490, 0.0
      %v569 = vmax.f32 %v493, 0.0
      %v570 = vmax.f32 %v495, 0.0
      %v571 = vmax.f32 %v498, 0.0
      %v572 = vmax.f32 %v500, 0.0
      %v573 = vmax.f32 %v503, 0.0
      %v574 = vmax.f32 %v505, 0.0
      %v575 = vmax.f32 %v508, 0.0
      %v576 = vmax.f32 %v510, 0.0
      %v577 = vmax.f32 %v513, 0.0
      %v578 = vmax.f32 %v515, 0.0
      %v579 = vmax.f32 %v518, 0.0
      %v580 = vmax.f32 %v520, 0.0
      %v581 = vmax.f32 %v523, 0.0
      %v582 = vmax.f32 %v525, 0.0
      %v583 = vmax.f32 %v528, 0.0
      %v584 = vmax.f32 %v530, 0.0
      %v585 = vmax.f32 %v533, 0.0
      %v586 = vmax.f32 %v535, 0.0
      %v587 = vmax.f32 %v538, 0.0
      %v588 = vmax.f32 %v540, 0.0
      %v589 = vmax.f32 %v543, 0.0
      %v590 = vmax.f32 %v545, 0.0
      %v591 = vmax.f32 %v548, 0.0
      %v592 = vmax.f32 %v550, 0.0
      %v593 = vmax.f32 %v553, 0.0
      %v594 = vmax.f32 %v555, 0.0
      %v595 = vmax.f32 %v558, 0.0
      %v596 = vmax.f32 %v560, 0.0
      %v597 = vmax.f32 %v563, 0.0
      %v598 = vmax.f32 %v565, 0.0
      %v599 = vpack.c.bf16 %v568, %v567
      %v600 = vpack.c.bf16 %v570, %v569
      %v601 = vpack.c.bf16 %v572, %v571
      %v602 = vpack.c.bf16 %v574, %v573
      %v603 = vpack.c.bf16 %v576, %v575
      %v604 = vpack.c.bf16 %v578, %v577
      %v605 = vpack.c.bf16 %v580, %v579
      %v606 = vpack.c.bf16 %v582, %v581
      %v607 = vpack.c.bf16 %v584, %v583
      %v608 = vpack.c.bf16 %v586, %v585
      %v609 = vpack.c.bf16 %v588, %v587
      %v610 = vpack.c.bf16 %v590, %v589
      %v611 = vpack.c.bf16 %v592, %v591
      %v612 = vpack.c.bf16 %v594, %v593
      %v613 = vpack.c.bf16 %v596, %v595
      %v614 = vpack.c.bf16 %v598, %v597
      %v615 = vld [vmem:[%s3] sm:$0xf]
      %v616 = vld [vmem:[%s3 + $0x4] sm:$0xf]
      %v617 = vld [vmem:[%s3 + $0x8] sm:$0xf]
      %v618 = vld [vmem:[%s3 + $0xc] sm:$0xf]
      %v619 = vld [vmem:[%s3 + $0x10] sm:$0xf]
      %v620 = vld [vmem:[%s3 + $0x14] sm:$0xf]
      %v621 = vld [vmem:[%s3 + $0x18] sm:$0xf]
      %v622 = vld [vmem:[%s3 + $0x1c] sm:$0xf]
      %v623 = vld [vmem:[%s3 + $0x20] sm:$0xf]
      %v624 = vld [vmem:[%s3 + $0x24] sm:$0xf]
      %v625 = vld [vmem:[%s3 + $0x28] sm:$0xf]
      %v626 = vld [vmem:[%s3 + $0x2c] sm:$0xf]
      %v627 = vld [vmem:[%s3 + $0x30] sm:$0xf]
      %v628 = vld [vmem:[%s3 + $0x34] sm:$0xf]
      %v629 = vld [vmem:[%s3 + $0x38] sm:$0xf]
      %v630 = vld [vmem:[%s3 + $0x3c] sm:$0xf]
      %v631 = vld [vmem:[%s4] sm:$0x1]
      %v633 = vperm.slane %v631, 0
      %v651 = vunpack.c.l.b16 %v615
      %v652 = vunpack.c.l.b16 %v616
      %v653 = vunpack.c.l.b16 %v617
      %v654 = vunpack.c.l.b16 %v618
      %v655 = vunpack.c.l.b16 %v619
      %v656 = vunpack.c.l.b16 %v620
      %v657 = vunpack.c.l.b16 %v621
      %v658 = vunpack.c.l.b16 %v622
      %v659 = vunpack.c.l.b16 %v623
      %v660 = vunpack.c.l.b16 %v624
      %v661 = vunpack.c.l.b16 %v625
      %v662 = vunpack.c.l.b16 %v626
      %v663 = vunpack.c.l.b16 %v627
      %v664 = vunpack.c.l.b16 %v628
      %v665 = vunpack.c.l.b16 %v629
      %v666 = vunpack.c.l.b16 %v630
      %v667 = vpack.c.b16 %v652, %v651
      %v668 = vpack.c.b16 %v654, %v653
      %v669 = vpack.c.b16 %v656, %v655
      %v670 = vpack.c.b16 %v658, %v657
      %v671 = vpack.c.b16 %v660, %v659
      %v672 = vpack.c.b16 %v662, %v661
      %v673 = vpack.c.b16 %v664, %v663
      %v674 = vpack.c.b16 %v666, %v665
      %683 = vmatpush.bf16.msra.mxu0 %v674
      %684 = vmatpush.bf16.msra.mxu0 %v673
      %685 = vmatpush.bf16.msra.mxu0 %v672
      %686 = vmatpush.bf16.msra.mxu0 %v671
      %687 = vmatpush.bf16.msra.mxu0 %v670
      %688 = vmatpush.bf16.msra.mxu0 %v669
      %689 = vmatpush.bf16.msra.mxu0 %v668
      %690 = vmatpush.bf16.msra.mxu0 %v667
      %691 = vmatmul.bf16.gmra.mxu0 %v599
      %v692 = vpop.f32.mrf.mxu0
      %v693 = vadd.f32 %v633, %v692
      %v694 = vpop.f32.mrf.mxu0
      %v695 = vadd.f32 %v633, %v694
      %696 = vmatmul.bf16.gmra.mxu0 %v600
      %v697 = vpop.f32.mrf.mxu0
      %v698 = vadd.f32 %v633, %v697
      %v699 = vpop.f32.mrf.mxu0
      %v700 = vadd.f32 %v633, %v699
      %701 = vmatmul.bf16.gmra.mxu0 %v601
      %v702 = vpop.f32.mrf.mxu0
      %v703 = vadd.f32 %v633, %v702
      %v704 = vpop.f32.mrf.mxu0
      %v705 = vadd.f32 %v633, %v704
      %706 = vmatmul.bf16.gmra.mxu0 %v602
      %v707 = vpop.f32.mrf.mxu0
      %v708 = vadd.f32 %v633, %v707
      %v709 = vpop.f32.mrf.mxu0
      %v710 = vadd.f32 %v633, %v709
      %711 = vmatmul.bf16.gmra.mxu0 %v603
      %v712 = vpop.f32.mrf.mxu0
      %v713 = vadd.f32 %v633, %v712
      %v714 = vpop.f32.mrf.mxu0
      %v715 = vadd.f32 %v633, %v714
      %716 = vmatmul.bf16.gmra.mxu0 %v604
      %v717 = vpop.f32.mrf.mxu0
      %v718 = vadd.f32 %v633, %v717
      %v719 = vpop.f32.mrf.mxu0
      %v720 = vadd.f32 %v633, %v719
      %721 = vmatmul.bf16.gmra.mxu0 %v605
      %v722 = vpop.f32.mrf.mxu0
      %v723 = vadd.f32 %v633, %v722
      %v724 = vpop.f32.mrf.mxu0
      %v725 = vadd.f32 %v633, %v724
      %726 = vmatmul.bf16.gmra.mxu0 %v606
      %v727 = vpop.f32.mrf.mxu0
      %v728 = vadd.f32 %v633, %v727
      %v729 = vpop.f32.mrf.mxu0
      %v730 = vadd.f32 %v633, %v729
      %731 = vmatmul.bf16.gmra.mxu0 %v607
      %v732 = vpop.f32.mrf.mxu0
      %v733 = vadd.f32 %v633, %v732
      %v734 = vpop.f32.mrf.mxu0
      %v735 = vadd.f32 %v633, %v734
      %736 = vmatmul.bf16.gmra.mxu0 %v608
      %v737 = vpop.f32.mrf.mxu0
      %v738 = vadd.f32 %v633, %v737
      %v739 = vpop.f32.mrf.mxu0
      %v740 = vadd.f32 %v633, %v739
      %741 = vmatmul.bf16.gmra.mxu0 %v609
      %v742 = vpop.f32.mrf.mxu0
      %v743 = vadd.f32 %v633, %v742
      %v744 = vpop.f32.mrf.mxu0
      %v745 = vadd.f32 %v633, %v744
      %746 = vmatmul.bf16.gmra.mxu0 %v610
      %v747 = vpop.f32.mrf.mxu0
      %v748 = vadd.f32 %v633, %v747
      %v749 = vpop.f32.mrf.mxu0
      %v750 = vadd.f32 %v633, %v749
      %751 = vmatmul.bf16.gmra.mxu0 %v611
      %v752 = vpop.f32.mrf.mxu0
      %v753 = vadd.f32 %v633, %v752
      %v754 = vpop.f32.mrf.mxu0
      %v755 = vadd.f32 %v633, %v754
      %756 = vmatmul.bf16.gmra.mxu0 %v612
      %v757 = vpop.f32.mrf.mxu0
      %v758 = vadd.f32 %v633, %v757
      %v759 = vpop.f32.mrf.mxu0
      %v760 = vadd.f32 %v633, %v759
      %761 = vmatmul.bf16.gmra.mxu0 %v613
      %v762 = vpop.f32.mrf.mxu0
      %v763 = vadd.f32 %v633, %v762
      %v764 = vpop.f32.mrf.mxu0
      %v765 = vadd.f32 %v633, %v764
      %766 = vmatmul.bf16.gmra.mxu0 %v614
      %v767 = vpop.f32.mrf.mxu0
      %v768 = vadd.f32 %v633, %v767
      %v769 = vpop.f32.mrf.mxu0
      %v770 = vadd.f32 %v633, %v769
      %771 = vdwg.mxu0
      %v772 = vmax.f32 %v693, 0.0
      %v773 = vmax.f32 %v695, 0.0
      %v774 = vmax.f32 %v698, 0.0
      %v775 = vmax.f32 %v700, 0.0
      %v776 = vmax.f32 %v703, 0.0
      %v777 = vmax.f32 %v705, 0.0
      %v778 = vmax.f32 %v708, 0.0
      %v779 = vmax.f32 %v710, 0.0
      %v780 = vmax.f32 %v713, 0.0
      %v781 = vmax.f32 %v715, 0.0
      %v782 = vmax.f32 %v718, 0.0
      %v783 = vmax.f32 %v720, 0.0
      %v784 = vmax.f32 %v723, 0.0
      %v785 = vmax.f32 %v725, 0.0
      %v786 = vmax.f32 %v728, 0.0
      %v787 = vmax.f32 %v730, 0.0
      %v788 = vmax.f32 %v733, 0.0
      %v789 = vmax.f32 %v735, 0.0
      %v790 = vmax.f32 %v738, 0.0
      %v791 = vmax.f32 %v740, 0.0
      %v792 = vmax.f32 %v743, 0.0
      %v793 = vmax.f32 %v745, 0.0
      %v794 = vmax.f32 %v748, 0.0
      %v795 = vmax.f32 %v750, 0.0
      %v796 = vmax.f32 %v753, 0.0
      %v797 = vmax.f32 %v755, 0.0
      %v798 = vmax.f32 %v758, 0.0
      %v799 = vmax.f32 %v760, 0.0
      %v800 = vmax.f32 %v763, 0.0
      %v801 = vmax.f32 %v765, 0.0
      %v802 = vmax.f32 %v768, 0.0
      %v803 = vmax.f32 %v770, 0.0
      %v804 = vpack.c.bf16 %v773, %v772
      %v805 = vpack.c.bf16 %v775, %v774
      %v806 = vpack.c.bf16 %v777, %v776
      %v807 = vpack.c.bf16 %v779, %v778
      %v808 = vpack.c.bf16 %v781, %v780
      %v809 = vpack.c.bf16 %v783, %v782
      %v810 = vpack.c.bf16 %v785, %v784
      %v811 = vpack.c.bf16 %v787, %v786
      %v812 = vpack.c.bf16 %v789, %v788
      %v813 = vpack.c.bf16 %v791, %v790
      %v814 = vpack.c.bf16 %v793, %v792
      %v815 = vpack.c.bf16 %v795, %v794
      %v816 = vpack.c.bf16 %v797, %v796
      %v817 = vpack.c.bf16 %v799, %v798
      %v818 = vpack.c.bf16 %v801, %v800
      %v819 = vpack.c.bf16 %v803, %v802
      %v820 = vld [vmem:[%s5] sm:$0xf]
      %v821 = vld [vmem:[%s5 + $0x4] sm:$0xf]
      %v822 = vld [vmem:[%s5 + $0x8] sm:$0xf]
      %v823 = vld [vmem:[%s5 + $0xc] sm:$0xf]
      %v824 = vld [vmem:[%s5 + $0x10] sm:$0xf]
      %v825 = vld [vmem:[%s5 + $0x14] sm:$0xf]
      %v826 = vld [vmem:[%s5 + $0x18] sm:$0xf]
      %v827 = vld [vmem:[%s5 + $0x1c] sm:$0xf]
      %v828 = vld [vmem:[%s5 + $0x20] sm:$0xf]
      %v829 = vld [vmem:[%s5 + $0x24] sm:$0xf]
      %v830 = vld [vmem:[%s5 + $0x28] sm:$0xf]
      %v831 = vld [vmem:[%s5 + $0x2c] sm:$0xf]
      %v832 = vld [vmem:[%s5 + $0x30] sm:$0xf]
      %v833 = vld [vmem:[%s5 + $0x34] sm:$0xf]
      %v834 = vld [vmem:[%s5 + $0x38] sm:$0xf]
      %v835 = vld [vmem:[%s5 + $0x3c] sm:$0xf]
      %v836 = vld [vmem:[%s6] sm:$0x1]
      %v838 = vperm.slane %v836, 0
      %v856 = vunpack.c.l.b16 %v820
      %v857 = vunpack.c.l.b16 %v821
      %v858 = vunpack.c.l.b16 %v822
      %v859 = vunpack.c.l.b16 %v823
      %v860 = vunpack.c.l.b16 %v824
      %v861 = vunpack.c.l.b16 %v825
      %v862 = vunpack.c.l.b16 %v826
      %v863 = vunpack.c.l.b16 %v827
      %v864 = vunpack.c.l.b16 %v828
      %v865 = vunpack.c.l.b16 %v829
      %v866 = vunpack.c.l.b16 %v830
      %v867 = vunpack.c.l.b16 %v831
      %v868 = vunpack.c.l.b16 %v832
      %v869 = vunpack.c.l.b16 %v833
      %v870 = vunpack.c.l.b16 %v834
      %v871 = vunpack.c.l.b16 %v835
      %v872 = vpack.c.b16 %v857, %v856
      %v873 = vpack.c.b16 %v859, %v858
      %v874 = vpack.c.b16 %v861, %v860
      %v875 = vpack.c.b16 %v863, %v862
      %v876 = vpack.c.b16 %v865, %v864
      %v877 = vpack.c.b16 %v867, %v866
      %v878 = vpack.c.b16 %v869, %v868
      %v879 = vpack.c.b16 %v871, %v870
      %888 = vmatpush.bf16.msra.mxu0 %v879
      %889 = vmatpush.bf16.msra.mxu0 %v878
      %890 = vmatpush.bf16.msra.mxu0 %v877
      %891 = vmatpush.bf16.msra.mxu0 %v876
      %892 = vmatpush.bf16.msra.mxu0 %v875
      %893 = vmatpush.bf16.msra.mxu0 %v874
      %894 = vmatpush.bf16.msra.mxu0 %v873
      %895 = vmatpush.bf16.msra.mxu0 %v872
      %896 = vmatmul.bf16.gmra.mxu0 %v804
      %v897 = vpop.f32.mrf.mxu0
      %v898 = vadd.f32 %v838, %v897
      %v899 = vpop.f32.mrf.mxu0
      %v900 = vadd.f32 %v838, %v899
      %901 = vmatmul.bf16.gmra.mxu0 %v805
      %v902 = vpop.f32.mrf.mxu0
      %v903 = vadd.f32 %v838, %v902
      %v904 = vpop.f32.mrf.mxu0
      %v905 = vadd.f32 %v838, %v904
      %906 = vmatmul.bf16.gmra.mxu0 %v806
      %v907 = vpop.f32.mrf.mxu0
      %v908 = vadd.f32 %v838, %v907
      %v909 = vpop.f32.mrf.mxu0
      %v910 = vadd.f32 %v838, %v909
      %911 = vmatmul.bf16.gmra.mxu0 %v807
      %v912 = vpop.f32.mrf.mxu0
      %v913 = vadd.f32 %v838, %v912
      %v914 = vpop.f32.mrf.mxu0
      %v915 = vadd.f32 %v838, %v914
      %916 = vmatmul.bf16.gmra.mxu0 %v808
      %v917 = vpop.f32.mrf.mxu0
      %v918 = vadd.f32 %v838, %v917
      %v919 = vpop.f32.mrf.mxu0
      %v920 = vadd.f32 %v838, %v919
      %921 = vmatmul.bf16.gmra.mxu0 %v809
      %v922 = vpop.f32.mrf.mxu0
      %v923 = vadd.f32 %v838, %v922
      %v924 = vpop.f32.mrf.mxu0
      %v925 = vadd.f32 %v838, %v924
      %926 = vmatmul.bf16.gmra.mxu0 %v810
      %v927 = vpop.f32.mrf.mxu0
      %v928 = vadd.f32 %v838, %v927
      %v929 = vpop.f32.mrf.mxu0
      %v930 = vadd.f32 %v838, %v929
      %931 = vmatmul.bf16.gmra.mxu0 %v811
      %v932 = vpop.f32.mrf.mxu0
      %v933 = vadd.f32 %v838, %v932
      %v934 = vpop.f32.mrf.mxu0
      %v935 = vadd.f32 %v838, %v934
      %936 = vmatmul.bf16.gmra.mxu0 %v812
      %v937 = vpop.f32.mrf.mxu0
      %v938 = vadd.f32 %v838, %v937
      %v939 = vpop.f32.mrf.mxu0
      %v940 = vadd.f32 %v838, %v939
      %941 = vmatmul.bf16.gmra.mxu0 %v813
      %v942 = vpop.f32.mrf.mxu0
      %v943 = vadd.f32 %v838, %v942
      %v944 = vpop.f32.mrf.mxu0
      %v945 = vadd.f32 %v838, %v944
      %946 = vmatmul.bf16.gmra.mxu0 %v814
      %v947 = vpop.f32.mrf.mxu0
      %v948 = vadd.f32 %v838, %v947
      %v949 = vpop.f32.mrf.mxu0
      %v950 = vadd.f32 %v838, %v949
      %951 = vmatmul.bf16.gmra.mxu0 %v815
      %v952 = vpop.f32.mrf.mxu0
      %v953 = vadd.f32 %v838, %v952
      %v954 = vpop.f32.mrf.mxu0
      %v955 = vadd.f32 %v838, %v954
      %956 = vmatmul.bf16.gmra.mxu0 %v816
      %v957 = vpop.f32.mrf.mxu0
      %v958 = vadd.f32 %v838, %v957
      %v959 = vpop.f32.mrf.mxu0
      %v960 = vadd.f32 %v838, %v959
      %961 = vmatmul.bf16.gmra.mxu0 %v817
      %v962 = vpop.f32.mrf.mxu0
      %v963 = vadd.f32 %v838, %v962
      %v964 = vpop.f32.mrf.mxu0
      %v965 = vadd.f32 %v838, %v964
      %966 = vmatmul.bf16.gmra.mxu0 %v818
      %v967 = vpop.f32.mrf.mxu0
      %v968 = vadd.f32 %v838, %v967
      %v969 = vpop.f32.mrf.mxu0
      %v970 = vadd.f32 %v838, %v969
      %971 = vmatmul.bf16.gmra.mxu0 %v819
      %v972 = vpop.f32.mrf.mxu0
      %v973 = vadd.f32 %v838, %v972
      %v974 = vpop.f32.mrf.mxu0
      %v975 = vadd.f32 %v838, %v974
      %976 = vdwg.mxu0
      %977 = vmax.xlane.f32.xlu0 %v898
      %v978 = vpop.xlane.xlu0 %977
      %979 = vmax.xlane.f32.xlu0 %v900
      %v980 = vpop.xlane.xlu0 %979
      %981 = vmax.xlane.f32.xlu0 %v903
      %v982 = vpop.xlane.xlu0 %981
      %983 = vmax.xlane.f32.xlu0 %v905
      %v984 = vpop.xlane.xlu0 %983
      %985 = vmax.xlane.f32.xlu0 %v908
      %v986 = vpop.xlane.xlu0 %985
      %987 = vmax.xlane.f32.xlu0 %v910
      %v988 = vpop.xlane.xlu0 %987
      %989 = vmax.xlane.f32.xlu0 %v913
      %v990 = vpop.xlane.xlu0 %989
      %991 = vmax.xlane.f32.xlu0 %v915
      %v992 = vpop.xlane.xlu0 %991
      %993 = vmax.xlane.f32.xlu0 %v918
      %v994 = vpop.xlane.xlu0 %993
      %995 = vmax.xlane.f32.xlu0 %v920
      %v996 = vpop.xlane.xlu0 %995
      %997 = vmax.xlane.f32.xlu0 %v923
      %v998 = vpop.xlane.xlu0 %997
      %999 = vmax.xlane.f32.xlu0 %v925
      %v1000 = vpop.xlane.xlu0 %999
      %1001 = vmax.xlane.f32.xlu0 %v928
      %v1002 = vpop.xlane.xlu0 %1001
      %1003 = vmax.xlane.f32.xlu0 %v930
      %v1004 = vpop.xlane.xlu0 %1003
      %1005 = vmax.xlane.f32.xlu0 %v933
      %v1006 = vpop.xlane.xlu0 %1005
      %1007 = vmax.xlane.f32.xlu0 %v935
      %v1008 = vpop.xlane.xlu0 %1007
      %1009 = vmax.xlane.f32.xlu0 %v938
      %v1010 = vpop.xlane.xlu0 %1009
      %1011 = vmax.xlane.f32.xlu0 %v940
      %v1012 = vpop.xlane.xlu0 %1011
      %1013 = vmax.xlane.f32.xlu0 %v943
      %v1014 = vpop.xlane.xlu0 %1013
      %1015 = vmax.xlane.f32.xlu0 %v945
      %v1016 = vpop.xlane.xlu0 %1015
      %1017 = vmax.xlane.f32.xlu0 %v948
      %v1018 = vpop.xlane.xlu0 %1017
      %1019 = vmax.xlane.f32.xlu0 %v950
      %v1020 = vpop.xlane.xlu0 %1019
      %1021 = vmax.xlane.f32.xlu0 %v953
      %v1022 = vpop.xlane.xlu0 %1021
      %1023 = vmax.xlane.f32.xlu0 %v955
      %v1024 = vpop.xlane.xlu0 %1023
      %1025 = vmax.xlane.f32.xlu0 %v958
      %v1026 = vpop.xlane.xlu0 %1025
      %1027 = vmax.xlane.f32.xlu0 %v960
      %v1028 = vpop.xlane.xlu0 %1027
      %1029 = vmax.xlane.f32.xlu0 %v963
      %v1030 = vpop.xlane.xlu0 %1029
      %1031 = vmax.xlane.f32.xlu0 %v965
      %v1032 = vpop.xlane.xlu0 %1031
      %1033 = vmax.xlane.f32.xlu0 %v968
      %v1034 = vpop.xlane.xlu0 %1033
      %1035 = vmax.xlane.f32.xlu0 %v970
      %v1036 = vpop.xlane.xlu0 %1035
      %1037 = vmax.xlane.f32.xlu0 %v973
      %v1038 = vpop.xlane.xlu0 %1037
      %1039 = vmax.xlane.f32.xlu0 %v975
      %v1040 = vpop.xlane.xlu0 %1039
      %v1041 = vsub.f32 %v898, %v978
      %v1042 = vsub.f32 %v900, %v980
      %v1043 = vsub.f32 %v903, %v982
      %v1044 = vsub.f32 %v905, %v984
      %v1045 = vsub.f32 %v908, %v986
      %v1046 = vsub.f32 %v910, %v988
      %v1047 = vsub.f32 %v913, %v990
      %v1048 = vsub.f32 %v915, %v992
      %v1049 = vsub.f32 %v918, %v994
      %v1050 = vsub.f32 %v920, %v996
      %v1051 = vsub.f32 %v923, %v998
      %v1052 = vsub.f32 %v925, %v1000
      %v1053 = vsub.f32 %v928, %v1002
      %v1054 = vsub.f32 %v930, %v1004
      %v1055 = vsub.f32 %v933, %v1006
      %v1056 = vsub.f32 %v935, %v1008
      %v1057 = vsub.f32 %v938, %v1010
      %v1058 = vsub.f32 %v940, %v1012
      %v1059 = vsub.f32 %v943, %v1014
      %v1060 = vsub.f32 %v945, %v1016
      %v1061 = vsub.f32 %v948, %v1018
      %v1062 = vsub.f32 %v950, %v1020
      %v1063 = vsub.f32 %v953, %v1022
      %v1064 = vsub.f32 %v955, %v1024
      %v1065 = vsub.f32 %v958, %v1026
      %v1066 = vsub.f32 %v960, %v1028
      %v1067 = vsub.f32 %v963, %v1030
      %v1068 = vsub.f32 %v965, %v1032
      %v1069 = vsub.f32 %v968, %v1034
      %v1070 = vsub.f32 %v970, %v1036
      %v1071 = vsub.f32 %v973, %v1038
      %v1072 = vsub.f32 %v975, %v1040
      %v1073 = vmul.f32 %v1041, 1.442695
      %v1074 = vpow.pop %v1073
      %v1075 = vmul.f32 %v1042, 1.442695
      %v1076 = vpow.pop %v1075
      %v1077 = vmul.f32 %v1043, 1.442695
      %v1078 = vpow.pop %v1077
      %v1079 = vmul.f32 %v1044, 1.442695
      %v1080 = vpow.pop %v1079
      %v1081 = vmul.f32 %v1045, 1.442695
      %v1082 = vpow.pop %v1081
      %v1083 = vmul.f32 %v1046, 1.442695
      %v1084 = vpow.pop %v1083
      %v1085 = vmul.f32 %v1047, 1.442695
      %v1086 = vpow.pop %v1085
      %v1087 = vmul.f32 %v1048, 1.442695
      %v1088 = vpow.pop %v1087
      %v1089 = vmul.f32 %v1049, 1.442695
      %v1090 = vpow.pop %v1089
      %v1091 = vmul.f32 %v1050, 1.442695
      %v1092 = vpow.pop %v1091
      %v1093 = vmul.f32 %v1051, 1.442695
      %v1094 = vpow.pop %v1093
      %v1095 = vmul.f32 %v1052, 1.442695
      %v1096 = vpow.pop %v1095
      %v1097 = vmul.f32 %v1053, 1.442695
      %v1098 = vpow.pop %v1097
      %v1099 = vmul.f32 %v1054, 1.442695
      %v1100 = vpow.pop %v1099
      %v1101 = vmul.f32 %v1055, 1.442695
      %v1102 = vpow.pop %v1101
      %v1103 = vmul.f32 %v1056, 1.442695
      %v1104 = vpow.pop %v1103
      %v1105 = vmul.f32 %v1057, 1.442695
      %v1106 = vpow.pop %v1105
      %v1107 = vmul.f32 %v1058, 1.442695
      %v1108 = vpow.pop %v1107
      %v1109 = vmul.f32 %v1059, 1.442695
      %v1110 = vpow.pop %v1109
      %v1111 = vmul.f32 %v1060, 1.442695
      %v1112 = vpow.pop %v1111
      %v1113 = vmul.f32 %v1061, 1.442695
      %v1114 = vpow.pop %v1113
      %v1115 = vmul.f32 %v1062, 1.442695
      %v1116 = vpow.pop %v1115
      %v1117 = vmul.f32 %v1063, 1.442695
      %v1118 = vpow.pop %v1117
      %v1119 = vmul.f32 %v1064, 1.442695
      %v1120 = vpow.pop %v1119
      %v1121 = vmul.f32 %v1065, 1.442695
      %v1122 = vpow.pop %v1121
      %v1123 = vmul.f32 %v1066, 1.442695
      %v1124 = vpow.pop %v1123
      %v1125 = vmul.f32 %v1067, 1.442695
      %v1126 = vpow.pop %v1125
      %v1127 = vmul.f32 %v1068, 1.442695
      %v1128 = vpow.pop %v1127
      %v1129 = vmul.f32 %v1069, 1.442695
      %v1130 = vpow.pop %v1129
      %v1131 = vmul.f32 %v1070, 1.442695
      %v1132 = vpow.pop %v1131
      %v1133 = vmul.f32 %v1071, 1.442695
      %v1134 = vpow.pop %v1133
      %v1135 = vmul.f32 %v1072, 1.442695
      %v1136 = vpow.pop %v1135
      %1137 = vadd.xlane.f32.xlu0 %v1074
      %v1138 = vpop.xlane.xlu0 %1137
      %1139 = vadd.xlane.f32.xlu0 %v1076
      %v1140 = vpop.xlane.xlu0 %1139
      %1141 = vadd.xlane.f32.xlu0 %v1078
      %v1142 = vpop.xlane.xlu0 %1141
      %1143 = vadd.xlane.f32.xlu0 %v1080
      %v1144 = vpop.xlane.xlu0 %1143
      %1145 = vadd.xlane.f32.xlu0 %v1082
      %v1146 = vpop.xlane.xlu0 %1145
      %1147 = vadd.xlane.f32.xlu0 %v1084
      %v1148 = vpop.xlane.xlu0 %1147
      %1149 = vadd.xlane.f32.xlu0 %v1086
      %v1150 = vpop.xlane.xlu0 %1149
      %1151 = vadd.xlane.f32.xlu0 %v1088
      %v1152 = vpop.xlane.xlu0 %1151
      %1153 = vadd.xlane.f32.xlu0 %v1090
      %v1154 = vpop.xlane.xlu0 %1153
      %1155 = vadd.xlane.f32.xlu0 %v1092
      %v1156 = vpop.xlane.xlu0 %1155
      %1157 = vadd.xlane.f32.xlu0 %v1094
      %v1158 = vpop.xlane.xlu0 %1157
      %1159 = vadd.xlane.f32.xlu0 %v1096
      %v1160 = vpop.xlane.xlu0 %1159
      %1161 = vadd.xlane.f32.xlu0 %v1098
      %v1162 = vpop.xlane.xlu0 %1161
      %1163 = vadd.xlane.f32.xlu0 %v1100
      %v1164 = vpop.xlane.xlu0 %1163
      %1165 = vadd.xlane.f32.xlu0 %v1102
      %v1166 = vpop.xlane.xlu0 %1165
      %1167 = vadd.xlane.f32.xlu0 %v1104
      %v1168 = vpop.xlane.xlu0 %1167
      %1169 = vadd.xlane.f32.xlu0 %v1106
      %v1170 = vpop.xlane.xlu0 %1169
      %1171 = vadd.xlane.f32.xlu0 %v1108
      %v1172 = vpop.xlane.xlu0 %1171
      %1173 = vadd.xlane.f32.xlu0 %v1110
      %v1174 = vpop.xlane.xlu0 %1173
      %1175 = vadd.xlane.f32.xlu0 %v1112
      %v1176 = vpop.xlane.xlu0 %1175
      %1177 = vadd.xlane.f32.xlu0 %v1114
      %v1178 = vpop.xlane.xlu0 %1177
      %1179 = vadd.xlane.f32.xlu0 %v1116
      %v1180 = vpop.xlane.xlu0 %1179
      %1181 = vadd.xlane.f32.xlu0 %v1118
      %v1182 = vpop.xlane.xlu0 %1181
      %1183 = vadd.xlane.f32.xlu0 %v1120
      %v1184 = vpop.xlane.xlu0 %1183
      %1185 = vadd.xlane.f32.xlu0 %v1122
      %v1186 = vpop.xlane.xlu0 %1185
      %1187 = vadd.xlane.f32.xlu0 %v1124
      %v1188 = vpop.xlane.xlu0 %1187
      %1189 = vadd.xlane.f32.xlu0 %v1126
      %v1190 = vpop.xlane.xlu0 %1189
      %1191 = vadd.xlane.f32.xlu0 %v1128
      %v1192 = vpop.xlane.xlu0 %1191
      %1193 = vadd.xlane.f32.xlu0 %v1130
      %v1194 = vpop.xlane.xlu0 %1193
      %1195 = vadd.xlane.f32.xlu0 %v1132
      %v1196 = vpop.xlane.xlu0 %1195
      %1197 = vadd.xlane.f32.xlu0 %v1134
      %v1198 = vpop.xlane.xlu0 %1197
      %1199 = vadd.xlane.f32.xlu0 %v1136
      %v1200 = vpop.xlane.xlu0 %1199
      %v1201 = vrcp.pop %v1138
      %v1202 = vrcp.pop %v1140
      %v1203 = vrcp.pop %v1142
      %v1204 = vrcp.pop %v1144
      %v1205 = vrcp.pop %v1146
      %v1206 = vrcp.pop %v1148
      %v1207 = vrcp.pop %v1150
      %v1208 = vrcp.pop %v1152
      %v1209 = vrcp.pop %v1154
      %v1210 = vrcp.pop %v1156
      %v1211 = vrcp.pop %v1158
      %v1212 = vrcp.pop %v1160
      %v1213 = vrcp.pop %v1162
      %v1214 = vrcp.pop %v1164
      %v1215 = vrcp.pop %v1166
      %v1216 = vrcp.pop %v1168
      %v1217 = vrcp.pop %v1170
      %v1218 = vrcp.pop %v1172
      %v1219 = vrcp.pop %v1174
      %v1220 = vrcp.pop %v1176
      %v1221 = vrcp.pop %v1178
      %v1222 = vrcp.pop %v1180
      %v1223 = vrcp.pop %v1182
      %v1224 = vrcp.pop %v1184
      %v1225 = vrcp.pop %v1186
      %v1226 = vrcp.pop %v1188
      %v1227 = vrcp.pop %v1190
      %v1228 = vrcp.pop %v1192
      %v1229 = vrcp.pop %v1194
      %v1230 = vrcp.pop %v1196
      %v1231 = vrcp.pop %v1198
      %v1232 = vrcp.pop %v1200
      %v1233 = vmul.f32 %v1074, %v1201
      %v1234 = vmul.f32 %v1076, %v1202
      %v1235 = vmul.f32 %v1078, %v1203
      %v1236 = vmul.f32 %v1080, %v1204
      %v1237 = vmul.f32 %v1082, %v1205
      %v1238 = vmul.f32 %v1084, %v1206
      %v1239 = vmul.f32 %v1086, %v1207
      %v1240 = vmul.f32 %v1088, %v1208
      %v1241 = vmul.f32 %v1090, %v1209
      %v1242 = vmul.f32 %v1092, %v1210
      %v1243 = vmul.f32 %v1094, %v1211
      %v1244 = vmul.f32 %v1096, %v1212
      %v1245 = vmul.f32 %v1098, %v1213
      %v1246 = vmul.f32 %v1100, %v1214
      %v1247 = vmul.f32 %v1102, %v1215
      %v1248 = vmul.f32 %v1104, %v1216
      %v1249 = vmul.f32 %v1106, %v1217
      %v1250 = vmul.f32 %v1108, %v1218
      %v1251 = vmul.f32 %v1110, %v1219
      %v1252 = vmul.f32 %v1112, %v1220
      %v1253 = vmul.f32 %v1114, %v1221
      %v1254 = vmul.f32 %v1116, %v1222
      %v1255 = vmul.f32 %v1118, %v1223
      %v1256 = vmul.f32 %v1120, %v1224
      %v1257 = vmul.f32 %v1122, %v1225
      %v1258 = vmul.f32 %v1124, %v1226
      %v1259 = vmul.f32 %v1126, %v1227
      %v1260 = vmul.f32 %v1128, %v1228
      %v1261 = vmul.f32 %v1130, %v1229
      %v1262 = vmul.f32 %v1132, %v1230
      %v1263 = vmul.f32 %v1134, %v1231
      %v1264 = vmul.f32 %v1136, %v1232
      %v1265 = vpack.c.bf16 %v1233, %v1233
      %v1266 = vpack.c.bf16 %v1234, %v1234
      %v1267 = vpack.c.bf16 %v1235, %v1235
      %v1268 = vpack.c.bf16 %v1236, %v1236
      %v1269 = vpack.c.bf16 %v1237, %v1237
      %v1270 = vpack.c.bf16 %v1238, %v1238
      %v1271 = vpack.c.bf16 %v1239, %v1239
      %v1272 = vpack.c.bf16 %v1240, %v1240
      %v1273 = vpack.c.bf16 %v1241, %v1241
      %v1274 = vpack.c.bf16 %v1242, %v1242
      %v1275 = vpack.c.bf16 %v1243, %v1243
      %v1276 = vpack.c.bf16 %v1244, %v1244
      %v1277 = vpack.c.bf16 %v1245, %v1245
      %v1278 = vpack.c.bf16 %v1246, %v1246
      %v1279 = vpack.c.bf16 %v1247, %v1247
      %v1280 = vpack.c.bf16 %v1248, %v1248
      %v1281 = vpack.c.bf16 %v1249, %v1249
      %v1282 = vpack.c.bf16 %v1250, %v1250
      %v1283 = vpack.c.bf16 %v1251, %v1251
      %v1284 = vpack.c.bf16 %v1252, %v1252
      %v1285 = vpack.c.bf16 %v1253, %v1253
      %v1286 = vpack.c.bf16 %v1254, %v1254
      %v1287 = vpack.c.bf16 %v1255, %v1255
      %v1288 = vpack.c.bf16 %v1256, %v1256
      %v1289 = vpack.c.bf16 %v1257, %v1257
      %v1290 = vpack.c.bf16 %v1258, %v1258
      %v1291 = vpack.c.bf16 %v1259, %v1259
      %v1292 = vpack.c.bf16 %v1260, %v1260
      %v1293 = vpack.c.bf16 %v1261, %v1261
      %v1294 = vpack.c.bf16 %v1262, %v1262
      %v1295 = vpack.c.bf16 %v1263, %v1263
      %v1296 = vpack.c.bf16 %v1264, %v1264
      %1297 = vst [vmem:[%s280] sm:$0xf] %v1265
      %1298 = vst [vmem:[%s280 + $0x4] sm:$0xf] %v1266
      %1299 = vst [vmem:[%s280 + $0x8] sm:$0xf] %v1267
      %1300 = vst [vmem:[%s280 + $0xc] sm:$0xf] %v1268
      %1301 = vst [vmem:[%s280 + $0x10] sm:$0xf] %v1269
      %1302 = vst [vmem:[%s280 + $0x14] sm:$0xf] %v1270
      %1303 = vst [vmem:[%s280 + $0x18] sm:$0xf] %v1271
      %1304 = vst [vmem:[%s280 + $0x1c] sm:$0xf] %v1272
      %1305 = vst [vmem:[%s280 + $0x20] sm:$0xf] %v1273
      %1306 = vst [vmem:[%s280 + $0x24] sm:$0xf] %v1274
      %1307 = vst [vmem:[%s280 + $0x28] sm:$0xf] %v1275
      %1308 = vst [vmem:[%s280 + $0x2c] sm:$0xf] %v1276
      %1309 = vst [vmem:[%s280 + $0x30] sm:$0xf] %v1277
      %1310 = vst [vmem:[%s280 + $0x34] sm:$0xf] %v1278
      %1311 = vst [vmem:[%s280 + $0x38] sm:$0xf] %v1279
      %1312 = vst [vmem:[%s280 + $0x3c] sm:$0xf] %v1280
      %1313 = vst [vmem:[%s280 + $0x40] sm:$0xf] %v1281
      %1314 = vst [vmem:[%s280 + $0x44] sm:$0xf] %v1282
      %1315 = vst [vmem:[%s280 + $0x48] sm:$0xf] %v1283
      %1316 = vst [vmem:[%s280 + $0x4c] sm:$0xf] %v1284
      %1317 = vst [vmem:[%s280 + $0x50] sm:$0xf] %v1285
      %1318 = vst [vmem:[%s280 + $0x54] sm:$0xf] %v1286
      %1319 = vst [vmem:[%s280 + $0x58] sm:$0xf] %v1287
      %1320 = vst [vmem:[%s280 + $0x5c] sm:$0xf] %v1288
      %1321 = vst [vmem:[%s280 + $0x60] sm:$0xf] %v1289
      %1322 = vst [vmem:[%s280 + $0x64] sm:$0xf] %v1290
      %1323 = vst [vmem:[%s280 + $0x68] sm:$0xf] %v1291
      %1324 = vst [vmem:[%s280 + $0x6c] sm:$0xf] %v1292
      %1325 = vst [vmem:[%s280 + $0x70] sm:$0xf] %v1293
      %1326 = vst [vmem:[%s280 + $0x74] sm:$0xf] %v1294
      %1327 = vst [vmem:[%s280 + $0x78] sm:$0xf] %v1295
      %1328 = vst [vmem:[%s280 + $0x7c] sm:$0xf] %v1296
      %s1329 = smul.u32 32, %s18
      %p1330 = scmp.lt.s32.totalorder %s1329, 63
      %s1331 = scalar_select %p1330, %s1329, 63
      %s1332 = smul.addr %s1331, 4
      %s1333 = scalar_lea.vmem %s7, %s1332
      // Predicated region
      $region49: #{_lambda_.1} parent=47 // pred_check
        %p1334 = pneg %p188
      $region50: #{_lambda_.1} parent=47 // pred_check_branch
        %1336 = sbr.rel (%p1334) target = $region52
      $region51: #{_lambda_.1} parent=47 // pred_region
        %s1337 = smul.u32 32, %s18
      $region52: #{_lambda_.1} parent=47 // pred_fallthru
        _
    $region48: #{_lambda_.1} parent=5 // pred_fallthru
      _
    %p1338 = scmp.le.s32.totalorder 2, %s13
    // Predicated region
    $region53: #{_lambda_.1} parent=5 // pred_check
      %p1339 = pneg %p1338
    $region54: #{_lambda_.1} parent=5 // pred_check_branch
      %1341 = sbr.rel (%p1339) target = $region56
    $region55: #{_lambda_.1} parent=5 // pred_region
      %s1342 = ssub.s32 %s13, 2
      // Predicated region
      $region57: #{_lambda_.1} parent=55 // pred_check
        %p1343 = pneg %p194
      $region58: #{_lambda_.1} parent=55 // pred_check_branch
        %1345 = sbr.rel (%p1343) target = $region60
      $region59: #{_lambda_.1} parent=55 // pred_region
        %s1346 = smul.u32 32, %s19
        %p1347 = scmp.lt.s32.totalorder %s1346, 63
        %s1348 = scalar_select %p1347, %s1346, 63
        %s1349 = smul.addr %s1348, 4
        %s1350 = scalar_lea.vmem %s7, %s1349
      $region60: #{_lambda_.1} parent=55 // pred_fallthru
        _
    $region56: #{_lambda_.1} parent=5 // pred_fallthru
      _
  $region6: #{_lambda_.1} parent=0 // loop_footer
    %s17 = sadd.s32 1, %s13
  $region7: #{_lambda_.1} parent=0 // loop_footer_branch
    %12 = sbr.rel target = $region3
  $region8: #{_lambda_.1} parent=0 // loop_exit
    _

</llo_original>
